<compile_context>
chip_gen: v7x
topology: tpu7x:2x2x1
jax: 0.10.0
libtpu: 0.0.40
codegen_flags: <defaults>
</compile_context>

<pallas_src>
from functools import partial

import jax
import jax.numpy as jnp
from jax import lax
from jax.experimental import pallas as pl
from jax.experimental.pallas import tpu as pltpu

_MAX_ROWS_PER_TILE = 64              # 64 rows x 128 lanes = 8192 positions/tile
_VMEM_TILE_BUDGET = 4 * 1024 * 1024  # conservative per-tile (double-buffered) budget


def _pick_rows_per_tile(r, cv, ce, itemsize):
    """Rows (of 128 lanes) per grid step: large, multiple of 8, VMEM-bounded."""
    bytes_per_row = ((cv + ce) * itemsize + 2 * 4) * 128 * 2  # x2 double-buffer
    ks = _VMEM_TILE_BUDGET // bytes_per_row
    ks = max(8, min(_MAX_ROWS_PER_TILE, (ks // 8) * 8))
    if r <= ks:
        return r          # full extent (allowed: equals the array dim)
    return ks


def _vox_ends_stats_kernel(lv_ref, le_ref, tv_ref, te_ref,
                           vc_ref, vn_ref, ec_ref, en_ref, mc_ref,
                           *, r_total, need_mask):
    """Accumulate per-class CE sufficient statistics for one (batch, tile) step.

    Shapes seen by the kernel (leading batch dim squeezed away):
      lv_ref: (Cv, KS, 128)   vox logits      (native dtype, cast here)
      le_ref: (Ce, KS, 128)   ends logits
      tv_ref: (KS, 128) i32   vox targets
      te_ref: (KS, 128) i32   ends targets
      vc/vn:  (Cv, SUB, 128)  per-class counts / NLL sums (lane-dense acc)
      ec/en:  (Ce, SUB, 128)  masked per-class counts / NLL sums
      mc:     (SUB, 128)      masked-position count
    """
    t = pl.program_id(1)

    @pl.when(t == 0)
    def _():
        vc_ref[...] = jnp.zeros_like(vc_ref)
        vn_ref[...] = jnp.zeros_like(vn_ref)
        ec_ref[...] = jnp.zeros_like(ec_ref)
        en_ref[...] = jnp.zeros_like(en_ref)
        mc_ref[...] = jnp.zeros_like(mc_ref)

    lv = lv_ref[...].astype(jnp.float32)          # (Cv, KS, 128)
    le = le_ref[...].astype(jnp.float32)          # (Ce, KS, 128)
    tv = tv_ref[...]                              # (KS, 128) int32
    te = te_ref[...]                              # (KS, 128) int32

    ks = tv.shape[0]
    sub = mc_ref.shape[0]

    def onehot_and_nll(x, tgt):
        # Class axis is axis 0 (not a vreg axis) -> reductions over it are
        # plain element-wise VPU/EUP work across (KS,128) slabs, no XLU.
        m = jnp.max(x, axis=0)                                   # (KS,128)
        z = x - m[None]                                          # (C,KS,128)
        lse = jnp.log(jnp.sum(jnp.exp(z), axis=0))               # (KS,128)
        cls = lax.broadcasted_iota(jnp.int32, x.shape, 0)        # (C,KS,128)
        onehot = tgt[None] == cls                                # bool
        picked = jnp.sum(jnp.where(onehot, z, 0.0), axis=0)      # z[target]
        return onehot, lse - picked                              # nll per pos

    oh_v, nll_v = onehot_and_nll(lv, tv)
    oh_e, nll_e = onehot_and_nll(le, te)

    if need_mask:
        # Ragged last tile: rows >= r_total carry undefined data.
        row = t * ks + lax.broadcasted_iota(jnp.int32, (ks, 128), 0)
        valid = row < r_total                                    # (KS,128)
        oh_v = oh_v & valid[None]
        pos_mask = (tv > 0) & valid
    else:
        pos_mask = tv > 0
    oh_e = oh_e & pos_mask[None]

    def rowsum(x):
        # Sum the KS row axis down to SUB rows with aligned vreg adds (VPU).
        acc = x[..., 0:sub, :]
        for g in range(1, ks // sub):
            acc = acc + x[..., g * sub:(g + 1) * sub, :]
        return acc

    vc_ref[...] += rowsum(oh_v.astype(jnp.float32))
    vn_ref[...] += rowsum(jnp.where(oh_v, nll_v[None], 0.0))
    ec_ref[...] += rowsum(oh_e.astype(jnp.float32))
    en_ref[...] += rowsum(jnp.where(oh_e, nll_e[None], 0.0))
    mc_ref[...] += rowsum(pos_mask.astype(jnp.float32))


def vox_ends_loss(input_vox, input_ends, target_vox, target_ends,
                  weight_vox=None, weight_ends=None, with_weight=True):
    B, Cv, H, W = input_vox.shape
    Ce = input_ends.shape[1]
    HW = H * W
    N = B * HW  # true number of positions (pre-padding)

    # Native layout, native dtype (no transpose, no f32 materialization).
    lv = input_vox.reshape(B, Cv, HW)
    le = input_ends.reshape(B, Ce, HW)
    tv = target_vox.reshape(B, HW).astype(jnp.int32)
    te = target_ends.reshape(B, HW).astype(jnp.int32)

    # Only pad when H*W is not already lane-aligned (common case: free path).
    pad = (-HW) % 128
    if pad:
        lv = jnp.pad(lv, ((0, 0), (0, 0), (0, pad)))
        le = jnp.pad(le, ((0, 0), (0, 0), (0, pad)))
        tv = jnp.pad(tv, ((0, 0), (0, pad)), constant_values=-1)
        te = jnp.pad(te, ((0, 0), (0, pad)), constant_values=-1)
    HWp = HW + pad
    R = HWp // 128

    lv = lv.reshape(B, Cv, R, 128)
    le = le.reshape(B, Ce, R, 128)
    tv = tv.reshape(B, R, 128)
    te = te.reshape(B, R, 128)

    itemsize = max(input_vox.dtype.itemsize, input_ends.dtype.itemsize)
    ks = _pick_rows_per_tile(R, Cv, Ce, itemsize)
    num_tiles = -(-R // ks)
    sub = 8 if ks % 8 == 0 else 1
    need_mask = (R % ks) != 0

    out_shapes = (
        jax.ShapeDtypeStruct((B, Cv, sub, 128), jnp.float32),  # vox counts
        jax.ShapeDtypeStruct((B, Cv, sub, 128), jnp.float32),  # vox NLL sums
        jax.ShapeDtypeStruct((B, Ce, sub, 128), jnp.float32),  # ends counts (masked)
        jax.ShapeDtypeStruct((B, Ce, sub, 128), jnp.float32),  # ends NLL sums (masked)
        jax.ShapeDtypeStruct((B, sub, 128), jnp.float32),      # masked-position count
    )
    in_specs = [
        pl.BlockSpec((None, Cv, ks, 128), lambda b, t: (b, 0, t, 0)),
        pl.BlockSpec((None, Ce, ks, 128), lambda b, t: (b, 0, t, 0)),
        pl.BlockSpec((None, ks, 128), lambda b, t: (b, t, 0)),
        pl.BlockSpec((None, ks, 128), lambda b, t: (b, t, 0)),
    ]
    out_specs = (
        pl.BlockSpec((None, Cv, sub, 128), lambda b, t: (b, 0, 0, 0)),
        pl.BlockSpec((None, Cv, sub, 128), lambda b, t: (b, 0, 0, 0)),
        pl.BlockSpec((None, Ce, sub, 128), lambda b, t: (b, 0, 0, 0)),
        pl.BlockSpec((None, Ce, sub, 128), lambda b, t: (b, 0, 0, 0)),
        pl.BlockSpec((None, sub, 128), lambda b, t: (b, 0, 0)),
    )

    kern = partial(_vox_ends_stats_kernel, r_total=R, need_mask=need_mask)
    vc, vn, ec, en, mc = pl.pallas_call(
        kern,
        out_shape=out_shapes,
        grid=(B, num_tiles),
        in_specs=in_specs,
        out_specs=out_specs,
        compiler_params=pltpu.CompilerParams(
            dimension_semantics=("parallel", "arbitrary")),
    )(lv, le, tv, te)

    # Tiny final reductions in plain JAX glue.
    vox_cnt = jnp.sum(vc, axis=(0, 2, 3))    # (Cv,)
    vox_nll = jnp.sum(vn, axis=(0, 2, 3))    # (Cv,)
    ends_cnt = jnp.sum(ec, axis=(0, 2, 3))   # (Ce,)
    ends_nll = jnp.sum(en, axis=(0, 2, 3))   # (Ce,)
    n_mask = jnp.sum(mc)

    n_total = jnp.float32(N)
    if with_weight:
        if weight_vox is None:
            w_v = 1.0 - vox_cnt / n_total + 1e-5
        else:
            w_v = jnp.asarray(weight_vox, jnp.float32)
        if weight_ends is None:
            w_e = 1.0 - ends_cnt / jnp.maximum(n_mask, 1.0) + 1e-5
        else:
            w_e = jnp.asarray(weight_ends, jnp.float32)
        # weighted-mean CE: sum_n w[y_n]*nll_n / sum_n w[y_n]
        loss_vox = jnp.sum(w_v * vox_nll) / jnp.maximum(jnp.sum(w_v * vox_cnt), 1e-12)
        loss_ends = jnp.sum(w_e * ends_nll) / jnp.maximum(jnp.sum(w_e * ends_cnt), 1e-12)
    else:
        loss_vox = jnp.sum(vox_nll) / n_total
        loss_ends = jnp.sum(ends_nll) / jnp.maximum(n_mask, 1.0)
    # Guard the degenerate "no position with target_vox > 0" case.
    loss_ends = jnp.where(n_mask > 0, loss_ends, 0.0)
    return loss_vox + loss_ends


def _reference_loss(iv, ie, tv, te):
    # pure-JAX reference for correctness checking
    B, Cv, H, W = iv.shape
    Ce = ie.shape[1]
    lv = jnp.transpose(iv, (1, 0, 2, 3)).reshape(Cv, -1)
    le = jnp.transpose(ie, (1, 0, 2, 3)).reshape(Ce, -1)
    tvf = tv.reshape(-1)
    tef = te.reshape(-1)
    n = tvf.shape[0]
    lpv = jax.nn.log_softmax(lv, axis=0)
    lpe = jax.nn.log_softmax(le, axis=0)
    idx = jnp.arange(n)
    nll_v = -lpv[tvf, idx]
    nll_e = -lpe[tef, idx]
    mask = (tvf > 0).astype(jnp.float32)
    cnt_v = jnp.stack([jnp.sum((tvf == c).astype(jnp.float32)) for c in range(Cv)])
    w_v = 1.0 - cnt_v / n + 1e-5
    cnt_e = jnp.stack([jnp.sum((tef == c).astype(jnp.float32) * mask) for c in range(Ce)])
    n_mask = jnp.sum(mask)
    w_e = 1.0 - cnt_e / n_mask + 1e-5
    loss_v = jnp.sum(w_v[tvf] * nll_v) / jnp.sum(w_v[tvf])
    loss_e = jnp.sum(w_e[tef] * nll_e * mask) / jnp.sum(w_e[tef] * mask)
    return loss_v + loss_e


if __name__ == "__main__":
    key = jax.random.PRNGKey(0)
    k1, k2, k3, k4 = jax.random.split(key, 4)

    B, Cv, Ce, H, W = 2, 4, 3, 16, 16
    input_vox = jax.random.normal(k1, (B, Cv, H, W), jnp.float32)
    input_ends = jax.random.normal(k2, (B, Ce, H, W), jnp.float32)
    target_vox = jax.random.randint(k3, (B, H, W), 0, Cv, jnp.int32)
    target_ends = jax.random.randint(k4, (B, H, W), 0, Ce, jnp.int32)

    loss = jax.block_until_ready(
        vox_ends_loss(input_vox, input_ends, target_vox, target_ends))

    ref = jax.block_until_ready(
        _reference_loss(input_vox, input_ends, target_vox, target_ends))
    assert jnp.allclose(loss, ref, rtol=1e-4, atol=1e-5), (loss, ref)

    print("KERNEL_OK")
</pallas_src>

<mosaic_0001>
module attributes {stable_mosaic.version = 11 : i64} {
  func.func @_vox_ends_stats_kernel(%arg0: i32, %arg1: i32, %arg2: memref<1x4x2x128xf32, #tpu.memory_space<vmem>>, %arg3: memref<1x3x2x128xf32, #tpu.memory_space<vmem>>, %arg4: memref<1x2x128xi32, #tpu.memory_space<vmem>>, %arg5: memref<1x2x128xi32, #tpu.memory_space<vmem>>, %arg6: memref<1x4x1x128xf32, #tpu.memory_space<vmem>>, %arg7: memref<1x4x1x128xf32, #tpu.memory_space<vmem>>, %arg8: memref<1x3x1x128xf32, #tpu.memory_space<vmem>>, %arg9: memref<1x3x1x128xf32, #tpu.memory_space<vmem>>, %arg10: memref<1x1x128xf32, #tpu.memory_space<vmem>>) attributes {dimension_semantics = [#tpu.dimension_semantics<parallel>, #tpu.dimension_semantics<arbitrary>], iteration_bounds = array<i64: 2, 1>, scalar_prefetch = 0 : i64, scratch_operands = 0 : i64, tpu.core_type = #tpu.core_type<tc>, window_params = [{transform_indices = @transform_0, window_bounds = array<i64: 1, 4, 2, 128>}, {transform_indices = @transform_1, window_bounds = array<i64: 1, 3, 2, 128>}, {transform_indices = @transform_2, window_bounds = array<i64: 1, 2, 128>}, {transform_indices = @transform_3, window_bounds = array<i64: 1, 2, 128>}, {transform_indices = @transform_4, window_bounds = array<i64: 1, 4, 1, 128>}, {transform_indices = @transform_5, window_bounds = array<i64: 1, 4, 1, 128>}, {transform_indices = @transform_6, window_bounds = array<i64: 1, 3, 1, 128>}, {transform_indices = @transform_7, window_bounds = array<i64: 1, 3, 1, 128>}, {transform_indices = @transform_8, window_bounds = array<i64: 1, 1, 128>}]} {
    %c0_i32 = arith.constant 0 : i32
    %0 = arith.cmpi eq, %arg1, %c0_i32 : i32
    %1 = arith.extui %0 : i1 to i32
    %c0_i32_0 = arith.constant 0 : i32
    %2 = arith.cmpi ne, %1, %c0_i32_0 : i32
    scf.if %2 {
      %cst_62 = arith.constant 0.000000e+00 : f32
      %107 = vector.broadcast %cst_62 : f32 to vector<4x1x128xf32>
      %c0_63 = arith.constant 0 : index
      %c0_64 = arith.constant 0 : index
      %c0_65 = arith.constant 0 : index
      %c0_66 = arith.constant 0 : index
      %108 = vector.load %arg6[%c0_63, %c0_64, %c0_65, %c0_66] : memref<1x4x1x128xf32, #tpu.memory_space<vmem>>, vector<1x4x1x128xf32>
      %109 = vector.shape_cast %108 : vector<1x4x1x128xf32> to vector<4x1x128xf32>
      %110 = vector.shape_cast %107 : vector<4x1x128xf32> to vector<1x4x1x128xf32>
      tpu.vector_store %arg6[%c0_63, %c0_64, %c0_65, %c0_66], %110 {strides = array<i32>} : memref<1x4x1x128xf32, #tpu.memory_space<vmem>>, vector<1x4x1x128xf32>,
      %cst_67 = arith.constant 0.000000e+00 : f32
      %111 = vector.broadcast %cst_67 : f32 to vector<4x1x128xf32>
      %c0_68 = arith.constant 0 : index
      %c0_69 = arith.constant 0 : index
      %c0_70 = arith.constant 0 : index
      %c0_71 = arith.constant 0 : index
      %112 = vector.load %arg7[%c0_68, %c0_69, %c0_70, %c0_71] : memref<1x4x1x128xf32, #tpu.memory_space<vmem>>, vector<1x4x1x128xf32>
      %113 = vector.shape_cast %112 : vector<1x4x1x128xf32> to vector<4x1x128xf32>
      %114 = vector.shape_cast %111 : vector<4x1x128xf32> to vector<1x4x1x128xf32>
      tpu.vector_store %arg7[%c0_68, %c0_69, %c0_70, %c0_71], %114 {strides = array<i32>} : memref<1x4x1x128xf32, #tpu.memory_space<vmem>>, vector<1x4x1x128xf32>,
      %cst_72 = arith.constant 0.000000e+00 : f32
      %115 = vector.broadcast %cst_72 : f32 to vector<3x1x128xf32>
      %c0_73 = arith.constant 0 : index
      %c0_74 = arith.constant 0 : index
      %c0_75 = arith.constant 0 : index
      %c0_76 = arith.constant 0 : index
      %116 = vector.load %arg8[%c0_73, %c0_74, %c0_75, %c0_76] : memref<1x3x1x128xf32, #tpu.memory_space<vmem>>, vector<1x3x1x128xf32>
      %117 = vector.shape_cast %116 : vector<1x3x1x128xf32> to vector<3x1x128xf32>
      %118 = vector.shape_cast %115 : vector<3x1x128xf32> to vector<1x3x1x128xf32>
      tpu.vector_store %arg8[%c0_73, %c0_74, %c0_75, %c0_76], %118 {strides = array<i32>} : memref<1x3x1x128xf32, #tpu.memory_space<vmem>>, vector<1x3x1x128xf32>,
      %cst_77 = arith.constant 0.000000e+00 : f32
      %119 = vector.broadcast %cst_77 : f32 to vector<3x1x128xf32>
      %c0_78 = arith.constant 0 : index
      %c0_79 = arith.constant 0 : index
      %c0_80 = arith.constant 0 : index
      %c0_81 = arith.constant 0 : index
      %120 = vector.load %arg9[%c0_78, %c0_79, %c0_80, %c0_81] : memref<1x3x1x128xf32, #tpu.memory_space<vmem>>, vector<1x3x1x128xf32>
      %121 = vector.shape_cast %120 : vector<1x3x1x128xf32> to vector<3x1x128xf32>
      %122 = vector.shape_cast %119 : vector<3x1x128xf32> to vector<1x3x1x128xf32>
      tpu.vector_store %arg9[%c0_78, %c0_79, %c0_80, %c0_81], %122 {strides = array<i32>} : memref<1x3x1x128xf32, #tpu.memory_space<vmem>>, vector<1x3x1x128xf32>,
      %cst_82 = arith.constant 0.000000e+00 : f32
      %123 = vector.broadcast %cst_82 : f32 to vector<1x128xf32>
      %c0_83 = arith.constant 0 : index
      %c0_84 = arith.constant 0 : index
      %c0_85 = arith.constant 0 : index
      %124 = vector.load %arg10[%c0_83, %c0_84, %c0_85] : memref<1x1x128xf32, #tpu.memory_space<vmem>>, vector<1x1x128xf32>
      %125 = vector.shape_cast %124 : vector<1x1x128xf32> to vector<1x128xf32>
      %126 = vector.shape_cast %123 : vector<1x128xf32> to vector<1x1x128xf32>
      tpu.vector_store %arg10[%c0_83, %c0_84, %c0_85], %126 {strides = array<i32>} : memref<1x1x128xf32, #tpu.memory_space<vmem>>, vector<1x1x128xf32>,
    } else {
    }
    %c0 = arith.constant 0 : index
    %c0_1 = arith.constant 0 : index
    %c0_2 = arith.constant 0 : index
    %c0_3 = arith.constant 0 : index
    %3 = vector.load %arg2[%c0, %c0_1, %c0_2, %c0_3] : memref<1x4x2x128xf32, #tpu.memory_space<vmem>>, vector<1x4x2x128xf32>
    %4 = vector.shape_cast %3 : vector<1x4x2x128xf32> to vector<4x2x128xf32>
    %c0_4 = arith.constant 0 : index
    %c0_5 = arith.constant 0 : index
    %c0_6 = arith.constant 0 : index
    %c0_7 = arith.constant 0 : index
    %5 = vector.load %arg3[%c0_4, %c0_5, %c0_6, %c0_7] : memref<1x3x2x128xf32, #tpu.memory_space<vmem>>, vector<1x3x2x128xf32>
    %6 = vector.shape_cast %5 : vector<1x3x2x128xf32> to vector<3x2x128xf32>
    %c0_8 = arith.constant 0 : index
    %c0_9 = arith.constant 0 : index
    %c0_10 = arith.constant 0 : index
    %7 = vector.load %arg4[%c0_8, %c0_9, %c0_10] : memref<1x2x128xi32, #tpu.memory_space<vmem>>, vector<1x2x128xi32>
    %8 = vector.shape_cast %7 : vector<1x2x128xi32> to vector<2x128xi32>
    %c0_11 = arith.constant 0 : index
    %c0_12 = arith.constant 0 : index
    %c0_13 = arith.constant 0 : index
    %9 = vector.load %arg5[%c0_11, %c0_12, %c0_13] : memref<1x2x128xi32, #tpu.memory_space<vmem>>, vector<1x2x128xi32>
    %10 = vector.shape_cast %9 : vector<1x2x128xi32> to vector<2x128xi32>
    %cst = arith.constant dense<0xFF800000> : vector<2x128xf32>
    %11 = vector.multi_reduction <maximumf>, %4, %cst [0] : vector<4x2x128xf32> to vector<2x128xf32>
    %12 = vector.shape_cast %11 : vector<2x128xf32> to vector<1x2x128xf32>
    %13 = vector.broadcast %12 : vector<1x2x128xf32> to vector<4x2x128xf32>
    %14 = arith.subf %4, %13 : vector<4x2x128xf32>
    %15 = math.exp %14 : vector<4x2x128xf32>
    %cst_14 = arith.constant dense<0.000000e+00> : vector<2x128xf32>
    %16 = vector.multi_reduction <add>, %15, %cst_14 [0] : vector<4x2x128xf32> to vector<2x128xf32>
    %17 = math.log %16 : vector<2x128xf32>
    %18 = tpu.iota {dimensions = array<i32: 0>} : vector<4x2x128xi32>
    %19 = vector.shape_cast %8 : vector<2x128xi32> to vector<1x2x128xi32>
    %20 = vector.broadcast %19 : vector<1x2x128xi32> to vector<4x2x128xi32>
    %21 = arith.cmpi eq, %20, %18 : vector<4x2x128xi32>
    %cst_15 = arith.constant 0.000000e+00 : f32
    %22 = vector.broadcast %cst_15 : f32 to vector<4x2x128xf32>
    %23 = arith.select %21, %14, %22 : vector<4x2x128xi1>, vector<4x2x128xf32>
    %cst_16 = arith.constant dense<0.000000e+00> : vector<2x128xf32>
    %24 = vector.multi_reduction <add>, %23, %cst_16 [0] : vector<4x2x128xf32> to vector<2x128xf32>
    %25 = arith.subf %17, %24 : vector<2x128xf32>
    %cst_17 = arith.constant dense<0xFF800000> : vector<2x128xf32>
    %26 = vector.multi_reduction <maximumf>, %6, %cst_17 [0] : vector<3x2x128xf32> to vector<2x128xf32>
    %27 = vector.shape_cast %26 : vector<2x128xf32> to vector<1x2x128xf32>
    %28 = vector.broadcast %27 : vector<1x2x128xf32> to vector<3x2x128xf32>
    %29 = arith.subf %6, %28 : vector<3x2x128xf32>
    %30 = math.exp %29 : vector<3x2x128xf32>
    %cst_18 = arith.constant dense<0.000000e+00> : vector<2x128xf32>
    %31 = vector.multi_reduction <add>, %30, %cst_18 [0] : vector<3x2x128xf32> to vector<2x128xf32>
    %32 = math.log %31 : vector<2x128xf32>
    %33 = tpu.iota {dimensions = array<i32: 0>} : vector<3x2x128xi32>
    %34 = vector.shape_cast %10 : vector<2x128xi32> to vector<1x2x128xi32>
    %35 = vector.broadcast %34 : vector<1x2x128xi32> to vector<3x2x128xi32>
    %36 = arith.cmpi eq, %35, %33 : vector<3x2x128xi32>
    %cst_19 = arith.constant 0.000000e+00 : f32
    %37 = vector.broadcast %cst_19 : f32 to vector<3x2x128xf32>
    %38 = arith.select %36, %29, %37 : vector<3x2x128xi1>, vector<3x2x128xf32>
    %cst_20 = arith.constant dense<0.000000e+00> : vector<2x128xf32>
    %39 = vector.multi_reduction <add>, %38, %cst_20 [0] : vector<3x2x128xf32> to vector<2x128xf32>
    %40 = arith.subf %32, %39 : vector<2x128xf32>
    %c0_i32_21 = arith.constant 0 : i32
    %41 = vector.broadcast %c0_i32_21 : i32 to vector<2x128xi32>
    %42 = arith.cmpi sgt, %8, %41 : vector<2x128xi32>
    %43 = vector.shape_cast %42 : vector<2x128xi1> to vector<1x2x128xi1>
    %44 = vector.broadcast %43 : vector<1x2x128xi1> to vector<3x2x128xi1>
    %45 = arith.andi %36, %44 : vector<3x2x128xi1>
    %c0_22 = arith.constant 0 : index
    %c0_23 = arith.constant 0 : index
    %c0_24 = arith.constant 0 : index
    %c0_25 = arith.constant 0 : index
    %46 = vector.load %arg6[%c0_22, %c0_23, %c0_24, %c0_25] : memref<1x4x1x128xf32, #tpu.memory_space<vmem>>, vector<1x4x1x128xf32>
    %47 = vector.shape_cast %46 : vector<1x4x1x128xf32> to vector<4x1x128xf32>
    %48 = arith.extui %21 : vector<4x2x128xi1> to vector<4x2x128xi32>
    %49 = arith.sitofp %48 : vector<4x2x128xi32> to vector<4x2x128xf32>
    %50 = vector.extract_strided_slice %49 {offsets = [0, 0, 0], sizes = [4, 1, 128], strides = [1, 1, 1]} : vector<4x2x128xf32> to vector<4x1x128xf32>
    %51 = vector.extract_strided_slice %49 {offsets = [0, 1, 0], sizes = [4, 1, 128], strides = [1, 1, 1]} : vector<4x2x128xf32> to vector<4x1x128xf32>
    %52 = arith.addf %50, %51 : vector<4x1x128xf32>
    %53 = arith.addf %47, %52 : vector<4x1x128xf32>
    %c0_26 = arith.constant 0 : index
    %c0_27 = arith.constant 0 : index
    %c0_28 = arith.constant 0 : index
    %c0_29 = arith.constant 0 : index
    %54 = vector.load %arg6[%c0_26, %c0_27, %c0_28, %c0_29] : memref<1x4x1x128xf32, #tpu.memory_space<vmem>>, vector<1x4x1x128xf32>
    %55 = vector.shape_cast %54 : vector<1x4x1x128xf32> to vector<4x1x128xf32>
    %56 = vector.shape_cast %53 : vector<4x1x128xf32> to vector<1x4x1x128xf32>
    tpu.vector_store %arg6[%c0_26, %c0_27, %c0_28, %c0_29], %56 {strides = array<i32>} : memref<1x4x1x128xf32, #tpu.memory_space<vmem>>, vector<1x4x1x128xf32>,
    %c0_30 = arith.constant 0 : index
    %c0_31 = arith.constant 0 : index
    %c0_32 = arith.constant 0 : index
    %c0_33 = arith.constant 0 : index
    %57 = vector.load %arg7[%c0_30, %c0_31, %c0_32, %c0_33] : memref<1x4x1x128xf32, #tpu.memory_space<vmem>>, vector<1x4x1x128xf32>
    %58 = vector.shape_cast %57 : vector<1x4x1x128xf32> to vector<4x1x128xf32>
    %59 = vector.shape_cast %25 : vector<2x128xf32> to vector<1x2x128xf32>
    %cst_34 = arith.constant 0.000000e+00 : f32
    %60 = vector.shape_cast %59 : vector<1x2x128xf32> to vector<1x2x128xf32>
    %61 = vector.broadcast %60 : vector<1x2x128xf32> to vector<4x2x128xf32>
    %62 = vector.broadcast %cst_34 : f32 to vector<4x2x128xf32>
    %63 = arith.select %21, %61, %62 : vector<4x2x128xi1>, vector<4x2x128xf32>
    %64 = vector.extract_strided_slice %63 {offsets = [0, 0, 0], sizes = [4, 1, 128], strides = [1, 1, 1]} : vector<4x2x128xf32> to vector<4x1x128xf32>
    %65 = vector.extract_strided_slice %63 {offsets = [0, 1, 0], sizes = [4, 1, 128], strides = [1, 1, 1]} : vector<4x2x128xf32> to vector<4x1x128xf32>
    %66 = arith.addf %64, %65 : vector<4x1x128xf32>
    %67 = arith.addf %58, %66 : vector<4x1x128xf32>
    %c0_35 = arith.constant 0 : index
    %c0_36 = arith.constant 0 : index
    %c0_37 = arith.constant 0 : index
    %c0_38 = arith.constant 0 : index
    %68 = vector.load %arg7[%c0_35, %c0_36, %c0_37, %c0_38] : memref<1x4x1x128xf32, #tpu.memory_space<vmem>>, vector<1x4x1x128xf32>
    %69 = vector.shape_cast %68 : vector<1x4x1x128xf32> to vector<4x1x128xf32>
    %70 = vector.shape_cast %67 : vector<4x1x128xf32> to vector<1x4x1x128xf32>
    tpu.vector_store %arg7[%c0_35, %c0_36, %c0_37, %c0_38], %70 {strides = array<i32>} : memref<1x4x1x128xf32, #tpu.memory_space<vmem>>, vector<1x4x1x128xf32>,
    %c0_39 = arith.constant 0 : index
    %c0_40 = arith.constant 0 : index
    %c0_41 = arith.constant 0 : index
    %c0_42 = arith.constant 0 : index
    %71 = vector.load %arg8[%c0_39, %c0_40, %c0_41, %c0_42] : memref<1x3x1x128xf32, #tpu.memory_space<vmem>>, vector<1x3x1x128xf32>
    %72 = vector.shape_cast %71 : vector<1x3x1x128xf32> to vector<3x1x128xf32>
    %73 = arith.extui %45 : vector<3x2x128xi1> to vector<3x2x128xi32>
    %74 = arith.sitofp %73 : vector<3x2x128xi32> to vector<3x2x128xf32>
    %75 = vector.extract_strided_slice %74 {offsets = [0, 0, 0], sizes = [3, 1, 128], strides = [1, 1, 1]} : vector<3x2x128xf32> to vector<3x1x128xf32>
    %76 = vector.extract_strided_slice %74 {offsets = [0, 1, 0], sizes = [3, 1, 128], strides = [1, 1, 1]} : vector<3x2x128xf32> to vector<3x1x128xf32>
    %77 = arith.addf %75, %76 : vector<3x1x128xf32>
    %78 = arith.addf %72, %77 : vector<3x1x128xf32>
    %c0_43 = arith.constant 0 : index
    %c0_44 = arith.constant 0 : index
    %c0_45 = arith.constant 0 : index
    %c0_46 = arith.constant 0 : index
    %79 = vector.load %arg8[%c0_43, %c0_44, %c0_45, %c0_46] : memref<1x3x1x128xf32, #tpu.memory_space<vmem>>, vector<1x3x1x128xf32>
    %80 = vector.shape_cast %79 : vector<1x3x1x128xf32> to vector<3x1x128xf32>
    %81 = vector.shape_cast %78 : vector<3x1x128xf32> to vector<1x3x1x128xf32>
    tpu.vector_store %arg8[%c0_43, %c0_44, %c0_45, %c0_46], %81 {strides = array<i32>} : memref<1x3x1x128xf32, #tpu.memory_space<vmem>>, vector<1x3x1x128xf32>,
    %c0_47 = arith.constant 0 : index
    %c0_48 = arith.constant 0 : index
    %c0_49 = arith.constant 0 : index
    %c0_50 = arith.constant 0 : index
    %82 = vector.load %arg9[%c0_47, %c0_48, %c0_49, %c0_50] : memref<1x3x1x128xf32, #tpu.memory_space<vmem>>, vector<1x3x1x128xf32>
    %83 = vector.shape_cast %82 : vector<1x3x1x128xf32> to vector<3x1x128xf32>
    %84 = vector.shape_cast %40 : vector<2x128xf32> to vector<1x2x128xf32>
    %cst_51 = arith.constant 0.000000e+00 : f32
    %85 = vector.shape_cast %84 : vector<1x2x128xf32> to vector<1x2x128xf32>
    %86 = vector.broadcast %85 : vector<1x2x128xf32> to vector<3x2x128xf32>
    %87 = vector.broadcast %cst_51 : f32 to vector<3x2x128xf32>
    %88 = arith.select %45, %86, %87 : vector<3x2x128xi1>, vector<3x2x128xf32>
    %89 = vector.extract_strided_slice %88 {offsets = [0, 0, 0], sizes = [3, 1, 128], strides = [1, 1, 1]} : vector<3x2x128xf32> to vector<3x1x128xf32>
    %90 = vector.extract_strided_slice %88 {offsets = [0, 1, 0], sizes = [3, 1, 128], strides = [1, 1, 1]} : vector<3x2x128xf32> to vector<3x1x128xf32>
    %91 = arith.addf %89, %90 : vector<3x1x128xf32>
    %92 = arith.addf %83, %91 : vector<3x1x128xf32>
    %c0_52 = arith.constant 0 : index
    %c0_53 = arith.constant 0 : index
    %c0_54 = arith.constant 0 : index
    %c0_55 = arith.constant 0 : index
    %93 = vector.load %arg9[%c0_52, %c0_53, %c0_54, %c0_55] : memref<1x3x1x128xf32, #tpu.memory_space<vmem>>, vector<1x3x1x128xf32>
    %94 = vector.shape_cast %93 : vector<1x3x1x128xf32> to vector<3x1x128xf32>
    %95 = vector.shape_cast %92 : vector<3x1x128xf32> to vector<1x3x1x128xf32>
    tpu.vector_store %arg9[%c0_52, %c0_53, %c0_54, %c0_55], %95 {strides = array<i32>} : memref<1x3x1x128xf32, #tpu.memory_space<vmem>>, vector<1x3x1x128xf32>,
    %c0_56 = arith.constant 0 : index
    %c0_57 = arith.constant 0 : index
    %c0_58 = arith.constant 0 : index
    %96 = vector.load %arg10[%c0_56, %c0_57, %c0_58] : memref<1x1x128xf32, #tpu.memory_space<vmem>>, vector<1x1x128xf32>
    %97 = vector.shape_cast %96 : vector<1x1x128xf32> to vector<1x128xf32>
    %98 = arith.extui %42 : vector<2x128xi1> to vector<2x128xi32>
    %99 = arith.sitofp %98 : vector<2x128xi32> to vector<2x128xf32>
    %100 = vector.extract_strided_slice %99 {offsets = [0, 0], sizes = [1, 128], strides = [1, 1]} : vector<2x128xf32> to vector<1x128xf32>
    %101 = vector.extract_strided_slice %99 {offsets = [1, 0], sizes = [1, 128], strides = [1, 1]} : vector<2x128xf32> to vector<1x128xf32>
    %102 = arith.addf %100, %101 : vector<1x128xf32>
    %103 = arith.addf %97, %102 : vector<1x128xf32>
    %c0_59 = arith.constant 0 : index
    %c0_60 = arith.constant 0 : index
    %c0_61 = arith.constant 0 : index
    %104 = vector.load %arg10[%c0_59, %c0_60, %c0_61] : memref<1x1x128xf32, #tpu.memory_space<vmem>>, vector<1x1x128xf32>
    %105 = vector.shape_cast %104 : vector<1x1x128xf32> to vector<1x128xf32>
    %106 = vector.shape_cast %103 : vector<1x128xf32> to vector<1x1x128xf32>
    tpu.vector_store %arg10[%c0_59, %c0_60, %c0_61], %106 {strides = array<i32>} : memref<1x1x128xf32, #tpu.memory_space<vmem>>, vector<1x1x128xf32>,
    return
  }
  func.func @transform_0(%arg0: i32, %arg1: i32) -> (i32, i32, i32, i32) {
    %c0_i32 = arith.constant 0 : i32
    %c0_i32_0 = arith.constant 0 : i32
    %c0_i32_1 = arith.constant 0 : i32
    return %arg0, %c0_i32, %arg1, %c0_i32_0 : i32, i32, i32, i32
  }
  func.func @transform_1(%arg0: i32, %arg1: i32) -> (i32, i32, i32, i32) {
    %c0_i32 = arith.constant 0 : i32
    %c0_i32_0 = arith.constant 0 : i32
    %c0_i32_1 = arith.constant 0 : i32
    return %arg0, %c0_i32, %arg1, %c0_i32_0 : i32, i32, i32, i32
  }
  func.func @transform_2(%arg0: i32, %arg1: i32) -> (i32, i32, i32) {
    %c0_i32 = arith.constant 0 : i32
    %c0_i32_0 = arith.constant 0 : i32
    return %arg0, %arg1, %c0_i32 : i32, i32, i32
  }
  func.func @transform_3(%arg0: i32, %arg1: i32) -> (i32, i32, i32) {
    %c0_i32 = arith.constant 0 : i32
    %c0_i32_0 = arith.constant 0 : i32
    return %arg0, %arg1, %c0_i32 : i32, i32, i32
  }
  func.func @transform_4(%arg0: i32, %arg1: i32) -> (i32, i32, i32, i32) {
    %c0_i32 = arith.constant 0 : i32
    %c0_i32_0 = arith.constant 0 : i32
    %c0_i32_1 = arith.constant 0 : i32
    %c0_i32_2 = arith.constant 0 : i32
    return %arg0, %c0_i32, %c0_i32_0, %c0_i32_1 : i32, i32, i32, i32
  }
  func.func @transform_5(%arg0: i32, %arg1: i32) -> (i32, i32, i32, i32) {
    %c0_i32 = arith.constant 0 : i32
    %c0_i32_0 = arith.constant 0 : i32
    %c0_i32_1 = arith.constant 0 : i32
    %c0_i32_2 = arith.constant 0 : i32
    return %arg0, %c0_i32, %c0_i32_0, %c0_i32_1 : i32, i32, i32, i32
  }
  func.func @transform_6(%arg0: i32, %arg1: i32) -> (i32, i32, i32, i32) {
    %c0_i32 = arith.constant 0 : i32
    %c0_i32_0 = arith.constant 0 : i32
    %c0_i32_1 = arith.constant 0 : i32
    %c0_i32_2 = arith.constant 0 : i32
    return %arg0, %c0_i32, %c0_i32_0, %c0_i32_1 : i32, i32, i32, i32
  }
  func.func @transform_7(%arg0: i32, %arg1: i32) -> (i32, i32, i32, i32) {
    %c0_i32 = arith.constant 0 : i32
    %c0_i32_0 = arith.constant 0 : i32
    %c0_i32_1 = arith.constant 0 : i32
    %c0_i32_2 = arith.constant 0 : i32
    return %arg0, %c0_i32, %c0_i32_0, %c0_i32_1 : i32, i32, i32, i32
  }
  func.func @transform_8(%arg0: i32, %arg1: i32) -> (i32, i32, i32) {
    %c0_i32 = arith.constant 0 : i32
    %c0_i32_0 = arith.constant 0 : i32
    %c0_i32_1 = arith.constant 0 : i32
    return %arg0, %c0_i32, %c0_i32_0 : i32, i32, i32
  }
}

</mosaic_0001>

<llo_original>
// kernel: tpu_custom_call.1
$region0: #{tpu_custom_call.1}
  #allocation0 [shape = 'u32[]', space=smem, size = 0x4, offset = 0x4, fixed_abs, tag = 'smem constant byte address 0x4 - core index']
  #allocation1 [shape = 'u32[144,128]{1,0:T(1,128)}', space=vmem, size = 0x12000, scoped, tag = 'internal scratch']
  %s0 = inlined_call_operand.hbm [shape: f32[2,4,2,128], index: 0, kind: input, shape index: {}]
  %s1 = inlined_call_operand.hbm [shape: f32[2,3,2,128], index: 1, kind: input, shape index: {}]
  %s2 = inlined_call_operand.vmem [shape: s32[2,2,128], index: 2, kind: input, shape index: {}]
  %s3 = inlined_call_operand.vmem [shape: s32[2,2,128], index: 3, kind: input, shape index: {}]
  %s4 = inlined_call_operand.hbm [shape: f32[2,4,1,128], index: 4, kind: output, shape index: {0}]
  %s5 = inlined_call_operand.hbm [shape: f32[2,4,1,128], index: 5, kind: output, shape index: {1}]
  %s6 = inlined_call_operand.hbm [shape: f32[2,3,1,128], index: 6, kind: output, shape index: {2}]
  %s7 = inlined_call_operand.hbm [shape: f32[2,3,1,128], index: 7, kind: output, shape index: {3}]
  %s8 = inlined_call_operand.hbm [shape: f32[2,1,128], index: 8, kind: output, shape index: {4}]
  %9 = xla_tuple %s4, %s5, %s6, %s7, %s8
  %s10 = sld [smem:[#allocation0]]
  $region93: #{tpu_custom_call.1} parent=0
    _
  %s12 = ssub.s32 1, %s10
  %s13 = scalar_select 0, %s12, %s10
  $region1: #{tpu_custom_call.1} parent=0
    #allocation2 [shape = 'u8[8192]{0}', space=vmem, size = 0x2000, scoped, tag = 'input window, operand 0']
    #allocation3 [shape = 's32[2]{0}', space=sflag, size = 0x8, scoped, tag = 'scoped memory for tpu_custom_call.1']
    #allocation4 [shape = 's32[2]{0}', space=sflag, size = 0x8, scoped, tag = 'scoped memory for tpu_custom_call.1']
    #allocation5 [shape = 'u8[6144]{0}', space=vmem, size = 0x1800, scoped, tag = 'input window, operand 1']
    #allocation6 [shape = 's32[2]{0}', space=sflag, size = 0x8, scoped, tag = 'scoped memory for tpu_custom_call.1']
    #allocation7 [shape = 'u8[4096]{0}', space=vmem, size = 0x1000, scoped, tag = 'output window, operand 0']
    #allocation8 [shape = 'u8[4096]{0}', space=vmem, size = 0x1000, scoped, tag = 'output window, operand 1']
    #allocation9 [shape = 's32[2]{0}', space=sflag, size = 0x8, scoped, tag = 'scoped memory for tpu_custom_call.1']
    #allocation10 [shape = 'u8[3072]{0}', space=vmem, size = 0xc00, scoped, tag = 'output window, operand 2']
    #allocation11 [shape = 'u8[3072]{0}', space=vmem, size = 0xc00, scoped, tag = 'output window, operand 3']
    #allocation12 [shape = 's32[2]{0}', space=sflag, size = 0x8, scoped, tag = 'scoped memory for tpu_custom_call.1']
    #allocation13 [shape = 'u8[1024]{0}', space=vmem, size = 0x400, scoped, tag = 'output window, operand 4']
    %14 = vsyncpa [#allocation3], 0
    %s15 = scalar_lea.sflag [#allocation3], 1
    %16 = vsyncpa %s15, 0
    %17 = vsyncpa [#allocation6], 0
    %s18 = scalar_lea.sflag [#allocation6], 1
    %19 = vsyncpa %s18, 0
    %20 = vsyncpa [#allocation4], 0
    %s21 = scalar_lea.sflag [#allocation4], 1
    %22 = vsyncpa %s21, 0
    %23 = vsyncpa [#allocation9], 0
    %s24 = scalar_lea.sflag [#allocation9], 1
    %25 = vsyncpa %s24, 0
    %26 = vsyncpa [#allocation12], 0
    %s27 = scalar_lea.sflag [#allocation12], 1
    %28 = vsyncpa %s27, 0
    loop: start=0, step=1, limit=4
    $region2: #{tpu_custom_call.1} parent=1 // loop_pre_header
      _
    $region3: #{tpu_custom_call.1} parent=1 // loop_header
      %s30 = sphi 0, %s34
      %p31 = scmp.ge.s32.totalorder %s30, 4
      %s37 = sphi 0, %s49
      %s38 = sphi 0, %s45
      %s39 = sphi 0, %s37
      %s40 = sphi 0, %s38
      %s41 = sphi 0, %s39
      %s42 = sphi 0, %s40
      %s54 = sphi 0, %s56
      %s57 = sphi 0, %s54
      %s58 = sphi 0, %s57
      %s74 = sphi 0, %s58
      %s82 = sphi 0, %s84
      %s85 = sphi 0, %s82
      %s86 = sphi 0, %s85
      %s102 = sphi 0, %s86
      %s110 = sphi 0, %s112
      %s113 = sphi 0, %s110
      %s114 = sphi 0, %s113
      %s130 = sphi 0, %s114
      %s138 = sphi 0, %s140
      %s141 = sphi 0, %s138
      %s142 = sphi 0, %s141
      %s158 = sphi 0, %s142
      %s164 = sphi 0, %s166
      %s167 = sphi 0, %s164
      %s168 = sphi 0, %s167
      %s184 = sphi 0, %s168
      %s190 = sphi 0, %s192
      %s193 = sphi 0, %s190
      %s194 = sphi 0, %s193
      %s210 = sphi 0, %s194
      %s216 = sphi 0, %s218
      %s219 = sphi 0, %s216
      %s220 = sphi 0, %s219
      %s236 = sphi 0, %s220
      %s242 = sphi 0, %s244
      %s245 = sphi 0, %s242
      %s246 = sphi 0, %s245
      %s262 = sphi 0, %s246
      %s268 = sphi 0, %s270
      %s271 = sphi 0, %s268
      %s272 = sphi 0, %s271
      %s288 = sphi 0, %s272
    $region4: #{tpu_custom_call.1} parent=1 // loop_header_branch
      %33 = sbr.rel (%p31) target = $region8
    $region5: #{tpu_custom_call.1} parent=1 // loop_body
      %s35 = ssub.s32 %s30, 1
      %s36 = ssub.s32 %s30, 2
      %s43 = sadd.s32 1, %s38
      %p44 = scmp.ge.s32.totalorder %s43, 1
      %s45 = scalar_select %p44, 0, %s43
      %s46 = sadd.s32 1, %s37
      %s47 = scalar_select %p44, %s46, %s37
      %p48 = scmp.ge.s32.totalorder %s47, 2
      %s49 = scalar_select %p48, 0, %s47
      %s50 = ssub.s32 %s37, %s49
      %s51 = ssub.s32 %s38, %s45
      %s52 = sor.u32 %s50, %s51
      %p53 = scmp.eq.s32.totalorder %s52, 0
      %s55 = sadd.s32 %s54, 1
      %s56 = scalar_select %p53, %s54, %s55
      %p59 = pneg %p53
      %p60 = scmp.eq.s32.totalorder %s30, 1
      %p61 = por %p59, %p60
      %p62 = scmp.ne.s32.totalorder %s54, %s57
      %p63 = scmp.eq.s32.totalorder %s30, 0
      %p64 = por %p62, %p63
      %p65 = scmp.ne.s32.totalorder %s54, %s57
      %p66 = scmp.eq.s32.totalorder %s35, 1
      %p67 = por %p65, %p66
      %p68 = scmp.ne.s32.totalorder %s57, %s58
      %p69 = scmp.eq.s32.totalorder %s35, 0
      %p70 = por %p68, %p69
      %p71 = scmp.ne.s32.totalorder %s57, %s58
      %p72 = scmp.eq.s32.totalorder %s36, 1
      %p73 = por %p71, %p72
      %p75 = scmp.ne.s32.totalorder %s58, %s74
      %p76 = scmp.eq.s32.totalorder %s36, 0
      %p77 = por %p75, %p76
      %s78 = ssub.s32 %s37, %s49
      %s79 = ssub.s32 %s38, %s45
      %s80 = sor.u32 %s78, %s79
      %p81 = scmp.eq.s32.totalorder %s80, 0
      %s83 = sadd.s32 %s82, 1
      %s84 = scalar_select %p81, %s82, %s83
      %p87 = pneg %p81
      %p88 = scmp.eq.s32.totalorder %s30, 1
      %p89 = por %p87, %p88
      %p90 = scmp.ne.s32.totalorder %s82, %s85
      %p91 = scmp.eq.s32.totalorder %s30, 0
      %p92 = por %p90, %p91
      %p93 = scmp.ne.s32.totalorder %s82, %s85
      %p94 = scmp.eq.s32.totalorder %s35, 1
      %p95 = por %p93, %p94
      %p96 = scmp.ne.s32.totalorder %s85, %s86
      %p97 = scmp.eq.s32.totalorder %s35, 0
      %p98 = por %p96, %p97
      %p99 = scmp.ne.s32.totalorder %s85, %s86
      %p100 = scmp.eq.s32.totalorder %s36, 1
      %p101 = por %p99, %p100
      %p103 = scmp.ne.s32.totalorder %s86, %s102
      %p104 = scmp.eq.s32.totalorder %s36, 0
      %p105 = por %p103, %p104
      %s106 = ssub.s32 %s37, %s49
      %s107 = ssub.s32 %s38, %s45
      %s108 = sor.u32 %s106, %s107
      %p109 = scmp.eq.s32.totalorder %s108, 0
      %s111 = sadd.s32 %s110, 1
      %s112 = scalar_select %p109, %s110, %s111
      %p115 = pneg %p109
      %p116 = scmp.eq.s32.totalorder %s30, 1
      %p117 = por %p115, %p116
      %p118 = scmp.ne.s32.totalorder %s110, %s113
      %p119 = scmp.eq.s32.totalorder %s30, 0
      %p120 = por %p118, %p119
      %p121 = scmp.ne.s32.totalorder %s110, %s113
      %p122 = scmp.eq.s32.totalorder %s35, 1
      %p123 = por %p121, %p122
      %p124 = scmp.ne.s32.totalorder %s113, %s114
      %p125 = scmp.eq.s32.totalorder %s35, 0
      %p126 = por %p124, %p125
      %p127 = scmp.ne.s32.totalorder %s113, %s114
      %p128 = scmp.eq.s32.totalorder %s36, 1
      %p129 = por %p127, %p128
      %p131 = scmp.ne.s32.totalorder %s114, %s130
      %p132 = scmp.eq.s32.totalorder %s36, 0
      %p133 = por %p131, %p132
      %s134 = ssub.s32 %s37, %s49
      %s135 = ssub.s32 %s38, %s45
      %s136 = sor.u32 %s134, %s135
      %p137 = scmp.eq.s32.totalorder %s136, 0
      %s139 = sadd.s32 %s138, 1
      %s140 = scalar_select %p137, %s138, %s139
      %p143 = pneg %p137
      %p144 = scmp.eq.s32.totalorder %s30, 1
      %p145 = por %p143, %p144
      %p146 = scmp.ne.s32.totalorder %s138, %s141
      %p147 = scmp.eq.s32.totalorder %s30, 0
      %p148 = por %p146, %p147
      %p149 = scmp.ne.s32.totalorder %s138, %s141
      %p150 = scmp.eq.s32.totalorder %s35, 1
      %p151 = por %p149, %p150
      %p152 = scmp.ne.s32.totalorder %s141, %s142
      %p153 = scmp.eq.s32.totalorder %s35, 0
      %p154 = por %p152, %p153
      %p155 = scmp.ne.s32.totalorder %s141, %s142
      %p156 = scmp.eq.s32.totalorder %s36, 1
      %p157 = por %p155, %p156
      %p159 = scmp.ne.s32.totalorder %s142, %s158
      %p160 = scmp.eq.s32.totalorder %s36, 0
      %p161 = por %p159, %p160
      %s162 = ssub.s32 %s37, %s49
      %p163 = scmp.eq.s32.totalorder %s162, 0
      %s165 = sadd.s32 %s164, 1
      %s166 = scalar_select %p163, %s164, %s165
      %p169 = pneg %p163
      %p170 = scmp.eq.s32.totalorder %s30, 1
      %p171 = por %p169, %p170
      %p172 = scmp.ne.s32.totalorder %s164, %s167
      %p173 = scmp.eq.s32.totalorder %s30, 0
      %p174 = por %p172, %p173
      %p175 = scmp.ne.s32.totalorder %s164, %s167
      %p176 = scmp.eq.s32.totalorder %s35, 1
      %p177 = por %p175, %p176
      %p178 = scmp.ne.s32.totalorder %s167, %s168
      %p179 = scmp.eq.s32.totalorder %s35, 0
      %p180 = por %p178, %p179
      %p181 = scmp.ne.s32.totalorder %s167, %s168
      %p182 = scmp.eq.s32.totalorder %s36, 1
      %p183 = por %p181, %p182
      %p185 = scmp.ne.s32.totalorder %s168, %s184
      %p186 = scmp.eq.s32.totalorder %s36, 0
      %p187 = por %p185, %p186
      %s188 = ssub.s32 %s37, %s49
      %p189 = scmp.eq.s32.totalorder %s188, 0
      %s191 = sadd.s32 %s190, 1
      %s192 = scalar_select %p189, %s190, %s191
      %p195 = pneg %p189
      %p196 = scmp.eq.s32.totalorder %s30, 1
      %p197 = por %p195, %p196
      %p198 = scmp.ne.s32.totalorder %s190, %s193
      %p199 = scmp.eq.s32.totalorder %s30, 0
      %p200 = por %p198, %p199
      %p201 = scmp.ne.s32.totalorder %s190, %s193
      %p202 = scmp.eq.s32.totalorder %s35, 1
      %p203 = por %p201, %p202
      %p204 = scmp.ne.s32.totalorder %s193, %s194
      %p205 = scmp.eq.s32.totalorder %s35, 0
      %p206 = por %p204, %p205
      %p207 = scmp.ne.s32.totalorder %s193, %s194
      %p208 = scmp.eq.s32.totalorder %s36, 1
      %p209 = por %p207, %p208
      %p211 = scmp.ne.s32.totalorder %s194, %s210
      %p212 = scmp.eq.s32.totalorder %s36, 0
      %p213 = por %p211, %p212
      %s214 = ssub.s32 %s37, %s49
      %p215 = scmp.eq.s32.totalorder %s214, 0
      %s217 = sadd.s32 %s216, 1
      %s218 = scalar_select %p215, %s216, %s217
      %p221 = pneg %p215
      %p222 = scmp.eq.s32.totalorder %s30, 1
      %p223 = por %p221, %p222
      %p224 = scmp.ne.s32.totalorder %s216, %s219
      %p225 = scmp.eq.s32.totalorder %s30, 0
      %p226 = por %p224, %p225
      %p227 = scmp.ne.s32.totalorder %s216, %s219
      %p228 = scmp.eq.s32.totalorder %s35, 1
      %p229 = por %p227, %p228
      %p230 = scmp.ne.s32.totalorder %s219, %s220
      %p231 = scmp.eq.s32.totalorder %s35, 0
      %p232 = por %p230, %p231
      %p233 = scmp.ne.s32.totalorder %s219, %s220
      %p234 = scmp.eq.s32.totalorder %s36, 1
      %p235 = por %p233, %p234
      %p237 = scmp.ne.s32.totalorder %s220, %s236
      %p238 = scmp.eq.s32.totalorder %s36, 0
      %p239 = por %p237, %p238
      %s240 = ssub.s32 %s37, %s49
      %p241 = scmp.eq.s32.totalorder %s240, 0
      %s243 = sadd.s32 %s242, 1
      %s244 = scalar_select %p241, %s242, %s243
      %p247 = pneg %p241
      %p248 = scmp.eq.s32.totalorder %s30, 1
      %p249 = por %p247, %p248
      %p250 = scmp.ne.s32.totalorder %s242, %s245
      %p251 = scmp.eq.s32.totalorder %s30, 0
      %p252 = por %p250, %p251
      %p253 = scmp.ne.s32.totalorder %s242, %s245
      %p254 = scmp.eq.s32.totalorder %s35, 1
      %p255 = por %p253, %p254
      %p256 = scmp.ne.s32.totalorder %s245, %s246
      %p257 = scmp.eq.s32.totalorder %s35, 0
      %p258 = por %p256, %p257
      %p259 = scmp.ne.s32.totalorder %s245, %s246
      %p260 = scmp.eq.s32.totalorder %s36, 1
      %p261 = por %p259, %p260
      %p263 = scmp.ne.s32.totalorder %s246, %s262
      %p264 = scmp.eq.s32.totalorder %s36, 0
      %p265 = por %p263, %p264
      %s266 = ssub.s32 %s37, %s49
      %p267 = scmp.eq.s32.totalorder %s266, 0
      %s269 = sadd.s32 %s268, 1
      %s270 = scalar_select %p267, %s268, %s269
      %p273 = pneg %p267
      %p274 = scmp.eq.s32.totalorder %s30, 1
      %p275 = por %p273, %p274
      %p276 = scmp.ne.s32.totalorder %s268, %s271
      %p277 = scmp.eq.s32.totalorder %s30, 0
      %p278 = por %p276, %p277
      %p279 = scmp.ne.s32.totalorder %s268, %s271
      %p280 = scmp.eq.s32.totalorder %s35, 1
      %p281 = por %p279, %p280
      %p282 = scmp.ne.s32.totalorder %s271, %s272
      %p283 = scmp.eq.s32.totalorder %s35, 0
      %p284 = por %p282, %p283
      %p285 = scmp.ne.s32.totalorder %s271, %s272
      %p286 = scmp.eq.s32.totalorder %s36, 1
      %p287 = por %p285, %p286
      %p289 = scmp.ne.s32.totalorder %s272, %s288
      %p290 = scmp.eq.s32.totalorder %s36, 0
      %p291 = por %p289, %p290
      %p292 = scmp.le.s32.totalorder 1, %s30
      %p293 = scmp.lt.s32.totalorder %s30, 3
      %p294 = pnand %p292, %p293
      %p295 = pneg %p294
      // Predicated region
      $region9: #{tpu_custom_call.1} parent=5 // pred_check
        _
      $region10: #{tpu_custom_call.1} parent=5 // pred_check_branch
        %297 = sbr.rel (%p294) target = $region12
      $region11: #{tpu_custom_call.1} parent=5 // pred_region
        %s298 = ssub.s32 %s30, 1
      $region12: #{tpu_custom_call.1} parent=5 // pred_fallthru
        _
      %p299 = scmp.lt.s32.totalorder %s30, 2
      // Predicated region
      $region13: #{tpu_custom_call.1} parent=5 // pred_check
        %p300 = pneg %p299
      $region14: #{tpu_custom_call.1} parent=5 // pred_check_branch
        %302 = sbr.rel (%p300) target = $region16
      $region15: #{tpu_custom_call.1} parent=5 // pred_region
        // Predicated region
        $region17: #{tpu_custom_call.1} parent=15 // pred_check
          %p303 = pneg %p64
        $region18: #{tpu_custom_call.1} parent=15 // pred_check_branch
          %305 = sbr.rel (%p303) target = $region20
        $region19: #{tpu_custom_call.1} parent=15 // pred_region
          %s306 = sand.u32 %s54, 1
          %s307 = scalar_lea.sflag [#allocation3], %s306
          %s308 = sand.u32 %s54, 1
          %s309 = smul.addr %s308, 8
          %s310 = scalar_lea.vmem [#allocation2], %s309
          %s312 = ssub.s32 128, 128
          %313 = vsyncadd %s307, %s312
          %s314 = smul.addr %s37, 4
          %s315 = sadd.s32 %s38, %s314
          %s316 = smul.addr %s315, 32
          %s317 = scalar_lea.hbm %s0, %s316
          %s318 = sshll.u32 %s310, 4
          %s319 = int_to_ptr.vmem [resolvable:$true] %s318
          %324 = dma.hbm_to_vmem [thread:$0]  %s317, 128, %s319, %s307, 32, 32, 2
        $region20: #{tpu_custom_call.1} parent=15 // pred_fallthru
          _
        // Predicated region
        $region21: #{tpu_custom_call.1} parent=15 // pred_check
          %p325 = pneg %p92
        $region22: #{tpu_custom_call.1} parent=15 // pred_check_branch
          %327 = sbr.rel (%p325) target = $region24
        $region23: #{tpu_custom_call.1} parent=15 // pred_region
          %s328 = sand.u32 %s82, 1
          %s329 = scalar_lea.sflag [#allocation6], %s328
          %s330 = sand.u32 %s82, 1
          %s331 = smul.addr %s330, 6
          %s332 = scalar_lea.vmem [#allocation5], %s331
          %s334 = ssub.s32 96, 96
          %335 = vsyncadd %s329, %s334
          %s336 = smul.addr %s37, 3
          %s337 = sadd.s32 %s38, %s336
          %s338 = smul.addr %s337, 32
          %s339 = scalar_lea.hbm %s1, %s338
          %s340 = sshll.u32 %s332, 4
          %s341 = int_to_ptr.vmem [resolvable:$true] %s340
          %346 = dma.hbm_to_vmem [thread:$0]  %s339, 96, %s341, %s329, 32, 32, 2
        $region24: #{tpu_custom_call.1} parent=15 // pred_fallthru
          _
        // Predicated region
        $region25: #{tpu_custom_call.1} parent=15 // pred_check
          %p347 = pneg %p120
        $region26: #{tpu_custom_call.1} parent=15 // pred_check_branch
          %349 = sbr.rel (%p347) target = $region28
        $region27: #{tpu_custom_call.1} parent=15 // pred_region
          %p350 = scmp.lt.s32.totalorder %s37, 1
          %s351 = scalar_select %p350, %s37, 1
          %p352 = scmp.lt.s32.totalorder %s38, 0
          %s353 = scalar_select %p352, %s38, 0
          %s354 = sadd.s32 %s353, %s351
          %s355 = smul.addr %s354, 2
          %s356 = scalar_lea.vmem %s2, %s355
        $region28: #{tpu_custom_call.1} parent=15 // pred_fallthru
          _
        // Predicated region
        $region29: #{tpu_custom_call.1} parent=15 // pred_check
          %p357 = pneg %p148
        $region30: #{tpu_custom_call.1} parent=15 // pred_check_branch
          %359 = sbr.rel (%p357) target = $region32
        $region31: #{tpu_custom_call.1} parent=15 // pred_region
          %p360 = scmp.lt.s32.totalorder %s37, 1
          %s361 = scalar_select %p360, %s37, 1
          %p362 = scmp.lt.s32.totalorder %s38, 0
          %s363 = scalar_select %p362, %s38, 0
          %s364 = sadd.s32 %s363, %s361
          %s365 = smul.addr %s364, 2
          %s366 = scalar_lea.vmem %s3, %s365
        $region32: #{tpu_custom_call.1} parent=15 // pred_fallthru
          _
      $region16: #{tpu_custom_call.1} parent=5 // pred_fallthru
        _
      %p367 = scmp.le.s32.totalorder 1, %s30
      %p368 = scmp.lt.s32.totalorder %s30, 3
      %p369 = pnand %p367, %p368
      %p370 = pneg %p369
      // Predicated region
      $region33: #{tpu_custom_call.1} parent=5 // pred_check
        _
      $region34: #{tpu_custom_call.1} parent=5 // pred_check_branch
        %372 = sbr.rel (%p369) target = $region36
      $region35: #{tpu_custom_call.1} parent=5 // pred_region
        %s373 = ssub.s32 %s30, 1
        %s374 = sand.u32 %s57, 1
        %s375 = scalar_lea.sflag [#allocation3], %s374
        %s376 = sand.u32 %s57, 1
        %s377 = smul.addr %s376, 8
        %s378 = scalar_lea.vmem [#allocation2], %s377
        // Predicated region
        $region37: #{tpu_custom_call.1} parent=35 // pred_check
          %p379 = pneg %p70
        $region38: #{tpu_custom_call.1} parent=35 // pred_check_branch
          %381 = sbr.rel (%p379) target = $region40
        $region39: #{tpu_custom_call.1} parent=35 // pred_region
          %382 = dma.done %s375, 128
        $region40: #{tpu_custom_call.1} parent=35 // pred_fallthru
          _
        %s383 = sand.u32 %s85, 1
        %s384 = scalar_lea.sflag [#allocation6], %s383
        %s385 = sand.u32 %s85, 1
        %s386 = smul.addr %s385, 6
        %s387 = scalar_lea.vmem [#allocation5], %s386
        // Predicated region
        $region41: #{tpu_custom_call.1} parent=35 // pred_check
          %p388 = pneg %p98
        $region42: #{tpu_custom_call.1} parent=35 // pred_check_branch
          %390 = sbr.rel (%p388) target = $region44
        $region43: #{tpu_custom_call.1} parent=35 // pred_region
          %391 = dma.done %s384, 96
        $region44: #{tpu_custom_call.1} parent=35 // pred_fallthru
          _
        %s392 = sand.u32 %s57, 1
        %s393 = scalar_lea.sflag [#allocation3], %s392
        %s394 = sand.u32 %s57, 1
        %s395 = smul.addr %s394, 8
        %s396 = scalar_lea.vmem [#allocation2], %s395
        %p397 = pneg %p70
        %p398 = pneg %p67
        %s399 = sand.u32 %s85, 1
        %s400 = scalar_lea.sflag [#allocation6], %s399
        %s401 = sand.u32 %s85, 1
        %s402 = smul.addr %s401, 6
        %s403 = scalar_lea.vmem [#allocation5], %s402
        %p404 = pneg %p98
        %p405 = pneg %p95
        %p406 = scmp.lt.s32.totalorder %s39, 1
        %s407 = scalar_select %p406, %s39, 1
        %p408 = scmp.lt.s32.totalorder %s40, 0
        %s409 = scalar_select %p408, %s40, 0
        %s410 = sadd.s32 %s409, %s407
        %s411 = smul.addr %s410, 2
        %s412 = scalar_lea.vmem %s2, %s411
        %p413 = pneg %p126
        %p414 = pneg %p123
        %p415 = scmp.lt.s32.totalorder %s39, 1
        %s416 = scalar_select %p415, %s39, 1
        %p417 = scmp.lt.s32.totalorder %s40, 0
        %s418 = scalar_select %p417, %s40, 0
        %s419 = sadd.s32 %s418, %s416
        %s420 = smul.addr %s419, 2
        %s421 = scalar_lea.vmem %s3, %s420
        %p422 = pneg %p154
        %p423 = pneg %p151
        %p424 = pneg %p180
        %p425 = pneg %p177
        %s426 = sand.u32 %s167, 1
        %s427 = scalar_lea.sflag [#allocation4], %s426
        %s428 = sand.u32 %s167, 1
        %s429 = smul.addr %s428, 4
        %s430 = scalar_lea.vmem [#allocation7], %s429
        %p431 = pneg %p206
        %p432 = pneg %p203
        %s433 = sand.u32 %s35, 1
        %s434 = scalar_lea.sflag [#allocation9], %s433
        %s435 = sand.u32 %s193, 1
        %s436 = smul.addr %s435, 4
        %s437 = scalar_lea.vmem [#allocation8], %s436
        %p438 = pneg %p232
        %p439 = pneg %p229
        %s440 = sand.u32 %s35, 1
        %s441 = scalar_lea.sflag [#allocation9], %s440
        %s442 = sand.u32 %s219, 1
        %s443 = smul.addr %s442, 3
        %s444 = scalar_lea.vmem [#allocation10], %s443
        %p445 = pneg %p258
        %p446 = pneg %p255
        %s447 = sand.u32 %s35, 1
        %s448 = scalar_lea.sflag [#allocation12], %s447
        %s449 = sand.u32 %s245, 1
        %s450 = smul.addr %s449, 3
        %s451 = scalar_lea.vmem [#allocation11], %s450
        %p452 = pneg %p284
        %p453 = pneg %p281
        %s454 = sand.u32 %s35, 1
        %s455 = scalar_lea.sflag [#allocation12], %s454
        %s456 = sand.u32 %s271, 1
        %s457 = scalar_lea.vmem [#allocation13], %s456
        %p458 = scmp.lt.s32.totalorder %s39, 1
        %s459 = scalar_select %p458, %s39, 1
        %p460 = scmp.lt.s32.totalorder %s40, 0
        %s461 = scalar_select %p460, %s40, 0
        %s462 = sadd.s32 %s461, %s459
        %s463 = smul.addr %s462, 2
        %s464 = scalar_lea.vmem %s2, %s463
        %p465 = scmp.lt.s32.totalorder %s39, 1
        %s466 = scalar_select %p465, %s39, 1
        %p467 = scmp.lt.s32.totalorder %s40, 0
        %s468 = scalar_select %p467, %s40, 0
        %s469 = sadd.s32 %s468, %s466
        %s470 = smul.addr %s469, 2
        %s471 = scalar_lea.vmem %s3, %s470
        %p472 = scmp.eq.s32.totalorder %s40, 0
        // Predicated region
        $region45: #{tpu_custom_call.1} parent=35 // pred_check
          %p473 = pneg %p472
        $region46: #{tpu_custom_call.1} parent=35 // pred_check_branch
          %475 = sbr.rel (%p473) target = $region48
        $region47: #{tpu_custom_call.1} parent=35 // pred_region
          %476 = vst [vmem:[%s430] sm:$0x1] 0.0
          %477 = vst [vmem:[%s430 + $0x1] sm:$0x1] 0.0
          %478 = vst [vmem:[%s430 + $0x2] sm:$0x1] 0.0
          %479 = vst [vmem:[%s430 + $0x3] sm:$0x1] 0.0
          %480 = vst [vmem:[%s437] sm:$0x1] 0.0
          %481 = vst [vmem:[%s437 + $0x1] sm:$0x1] 0.0
          %482 = vst [vmem:[%s437 + $0x2] sm:$0x1] 0.0
          %483 = vst [vmem:[%s437 + $0x3] sm:$0x1] 0.0
          %484 = vst [vmem:[%s444] sm:$0x1] 0.0
          %485 = vst [vmem:[%s444 + $0x1] sm:$0x1] 0.0
          %486 = vst [vmem:[%s444 + $0x2] sm:$0x1] 0.0
          %487 = vst [vmem:[%s451] sm:$0x1] 0.0
          %488 = vst [vmem:[%s451 + $0x1] sm:$0x1] 0.0
          %489 = vst [vmem:[%s451 + $0x2] sm:$0x1] 0.0
          %490 = vst [vmem:[%s457] sm:$0x1] 0.0
        $region48: #{tpu_custom_call.1} parent=35 // pred_fallthru
          _
        %v491 = vld [vmem:[%s378] sm:$0x3]
        %v492 = vld [vmem:[%s378 + $0x2] sm:$0x3]
        %v493 = vld [vmem:[%s378 + $0x4] sm:$0x3]
        %v494 = vld [vmem:[%s378 + $0x6] sm:$0x3]
        %v495 = vld [vmem:[%s387] sm:$0x3]
        %v496 = vld [vmem:[%s387 + $0x2] sm:$0x3]
        %v497 = vld [vmem:[%s387 + $0x4] sm:$0x3]
        %v498 = vld [vmem:[%s464] sm:$0x3]
        %v499 = vld [vmem:[%s471] sm:$0x3]
        %vm500 = vcmask 1041408
        %v501 = vsel %vm500, %v491, -inf
        %v502 = vsel %vm500, %v492, -inf
        %v503 = vsel %vm500, %v493, -inf
        %v504 = vsel %vm500, %v494, -inf
        %v505 = vmax.f32 %v501, %v502
        %v506 = vmax.f32 %v503, %v504
        %v507 = vmax.f32 %v505, %v506
        %v508 = vsub.f32 %v491, %v507
        %v509 = vsub.f32 %v492, %v507
        %v510 = vsub.f32 %v493, %v507
        %v511 = vsub.f32 %v494, %v507
        %v512 = vmul.f32 %v508, 1.442695
        %v513 = vpow.pop %v512
        %v514 = vmul.f32 %v509, 1.442695
        %v515 = vpow.pop %v514
        %v516 = vmul.f32 %v510, 1.442695
        %v517 = vpow.pop %v516
        %v518 = vmul.f32 %v511, 1.442695
        %v519 = vpow.pop %v518
        %v520 = vsel %vm500, %v513, 0.0
        %v521 = vsel %vm500, %v515, 0.0
        %v522 = vadd.f32 %v520, %v521
        %v523 = vsel %vm500, %v517, 0.0
        %v524 = vadd.f32 %v522, %v523
        %v525 = vsel %vm500, %v519, 0.0
        %v526 = vadd.f32 %v524, %v525
        %v527 = vlog2.pop %v526
        %v528 = vmul.f32 %v527, 0.6931472
        %vm529 = vcmp.eq.s32.totalorder %v498, 0
        %vm530 = vcmp.eq.s32.totalorder %v498, 1
        %vm531 = vcmp.eq.s32.totalorder %v498, 2
        %vm532 = vcmp.eq.s32.totalorder %v498, 3
        %v533 = vsel %vm529, %v508, 0.0
        %v534 = vsel %vm530, %v509, 0.0
        %v535 = vsel %vm531, %v510, 0.0
        %v536 = vsel %vm532, %v511, 0.0
        %v537 = vsel %vm500, %v533, 0.0
        %v538 = vsel %vm500, %v534, 0.0
        %v539 = vadd.f32 %v537, %v538
        %v540 = vsel %vm500, %v535, 0.0
        %v541 = vadd.f32 %v539, %v540
        %v542 = vsel %vm500, %v536, 0.0
        %v543 = vadd.f32 %v541, %v542
        %v544 = vsub.f32 %v528, %v543
        %v545 = vsel %vm500, %v495, -inf
        %v546 = vsel %vm500, %v496, -inf
        %v547 = vsel %vm500, %v497, -inf
        %v548 = vmax.f32 %v545, %v546
        %v549 = vmax.f32 %v548, %v547
        %v550 = vsub.f32 %v495, %v549
        %v551 = vsub.f32 %v496, %v549
        %v552 = vsub.f32 %v497, %v549
        %v553 = vmul.f32 %v550, 1.442695
        %v554 = vpow.pop %v553
        %v555 = vmul.f32 %v551, 1.442695
        %v556 = vpow.pop %v555
        %v557 = vmul.f32 %v552, 1.442695
        %v558 = vpow.pop %v557
        %v559 = vsel %vm500, %v554, 0.0
        %v560 = vsel %vm500, %v556, 0.0
        %v561 = vadd.f32 %v559, %v560
        %v562 = vsel %vm500, %v558, 0.0
        %v563 = vadd.f32 %v561, %v562
        %v564 = vlog2.pop %v563
        %v565 = vmul.f32 %v564, 0.6931472
        %vm566 = vcmp.eq.s32.totalorder %v499, 0
        %vm567 = vcmp.eq.s32.totalorder %v499, 1
        %vm568 = vcmp.eq.s32.totalorder %v499, 2
        %v569 = vsel %vm566, %v550, 0.0
        %v570 = vsel %vm567, %v551, 0.0
        %v571 = vsel %vm568, %v552, 0.0
        %v572 = vsel %vm500, %v569, 0.0
        %v573 = vsel %vm500, %v570, 0.0
        %v574 = vadd.f32 %v572, %v573
        %v575 = vsel %vm500, %v571, 0.0
        %v576 = vadd.f32 %v574, %v575
        %v577 = vsub.f32 %v565, %v576
        %vm578 = vcmp.gt.s32.totalorder %v498, 0
        %v579 = vsel %vm578, 1, 0
        %vm580 = vcmp.eq.s32.totalorder %v579, 1
        %vm581 = vmand %vm566, %vm580
        %vm582 = vmand %vm567, %vm580
        %vm583 = vmand %vm568, %vm580
        %v584 = vld [vmem:[%s430] sm:$0x1]
        %v585 = vld [vmem:[%s430 + $0x1] sm:$0x1]
        %v586 = vld [vmem:[%s430 + $0x2] sm:$0x1]
        %v587 = vld [vmem:[%s430 + $0x3] sm:$0x1]
        %v588 = vsel %vm529, 1, 0
        %v589 = vsel %vm530, 1, 0
        %v590 = vsel %vm531, 1, 0
        %v591 = vsel %vm532, 1, 0
        %v592 = vcvt.s32.f32 %v588
        %v593 = vcvt.s32.f32 %v589
        %v594 = vcvt.s32.f32 %v590
        %v595 = vcvt.s32.f32 %v591
        %v600 = vrot.slane %v592, 1
        %v601 = vrot.slane %v593, 1
        %v602 = vrot.slane %v594, 1
        %v603 = vrot.slane %v595, 1
        %v608 = vadd.f32 %v592, %v600
        %v609 = vadd.f32 %v593, %v601
        %v610 = vadd.f32 %v594, %v602
        %v611 = vadd.f32 %v595, %v603
        %v612 = vadd.f32 %v584, %v608
        %v613 = vadd.f32 %v585, %v609
        %v614 = vadd.f32 %v586, %v610
        %v615 = vadd.f32 %v587, %v611
        %616 = vst [vmem:[%s430] sm:$0x1] %v612
        %617 = vst [vmem:[%s430 + $0x1] sm:$0x1] %v613
        %618 = vst [vmem:[%s430 + $0x2] sm:$0x1] %v614
        %619 = vst [vmem:[%s430 + $0x3] sm:$0x1] %v615
        %v620 = vld [vmem:[%s437] sm:$0x1]
        %v621 = vld [vmem:[%s437 + $0x1] sm:$0x1]
        %v622 = vld [vmem:[%s437 + $0x2] sm:$0x1]
        %v623 = vld [vmem:[%s437 + $0x3] sm:$0x1]
        %v624 = vsel %vm529, %v544, 0.0
        %v625 = vsel %vm530, %v544, 0.0
        %v626 = vsel %vm531, %v544, 0.0
        %v627 = vsel %vm532, %v544, 0.0
        %v632 = vrot.slane %v624, 1
        %v633 = vrot.slane %v625, 1
        %v634 = vrot.slane %v626, 1
        %v635 = vrot.slane %v627, 1
        %v640 = vadd.f32 %v624, %v632
        %v641 = vadd.f32 %v625, %v633
        %v642 = vadd.f32 %v626, %v634
        %v643 = vadd.f32 %v627, %v635
        %v644 = vadd.f32 %v620, %v640
        %v645 = vadd.f32 %v621, %v641
        %v646 = vadd.f32 %v622, %v642
        %v647 = vadd.f32 %v623, %v643
        %648 = vst [vmem:[%s437] sm:$0x1] %v644
        %649 = vst [vmem:[%s437 + $0x1] sm:$0x1] %v645
        %650 = vst [vmem:[%s437 + $0x2] sm:$0x1] %v646
        %651 = vst [vmem:[%s437 + $0x3] sm:$0x1] %v647
        %v652 = vld [vmem:[%s444] sm:$0x1]
        %v653 = vld [vmem:[%s444 + $0x1] sm:$0x1]
        %v654 = vld [vmem:[%s444 + $0x2] sm:$0x1]
        %v655 = vsel %vm581, 1, 0
        %v656 = vsel %vm582, 1, 0
        %v657 = vsel %vm583, 1, 0
        %v658 = vcvt.s32.f32 %v655
        %v659 = vcvt.s32.f32 %v656
        %v660 = vcvt.s32.f32 %v657
        %v664 = vrot.slane %v658, 1
        %v665 = vrot.slane %v659, 1
        %v666 = vrot.slane %v660, 1
        %v670 = vadd.f32 %v658, %v664
        %v671 = vadd.f32 %v659, %v665
        %v672 = vadd.f32 %v660, %v666
        %v673 = vadd.f32 %v652, %v670
        %v674 = vadd.f32 %v653, %v671
        %v675 = vadd.f32 %v654, %v672
        %676 = vst [vmem:[%s444] sm:$0x1] %v673
        %677 = vst [vmem:[%s444 + $0x1] sm:$0x1] %v674
        %678 = vst [vmem:[%s444 + $0x2] sm:$0x1] %v675
        %v679 = vld [vmem:[%s451] sm:$0x1]
        %v680 = vld [vmem:[%s451 + $0x1] sm:$0x1]
        %v681 = vld [vmem:[%s451 + $0x2] sm:$0x1]
        %v682 = vsel %vm581, %v577, 0.0
        %v683 = vsel %vm582, %v577, 0.0
        %v684 = vsel %vm583, %v577, 0.0
        %v688 = vrot.slane %v682, 1
        %v689 = vrot.slane %v683, 1
        %v690 = vrot.slane %v684, 1
        %v694 = vadd.f32 %v682, %v688
        %v695 = vadd.f32 %v683, %v689
        %v696 = vadd.f32 %v684, %v690
        %v697 = vadd.f32 %v679, %v694
        %v698 = vadd.f32 %v680, %v695
        %v699 = vadd.f32 %v681, %v696
        %700 = vst [vmem:[%s451] sm:$0x1] %v697
        %701 = vst [vmem:[%s451 + $0x1] sm:$0x1] %v698
        %702 = vst [vmem:[%s451 + $0x2] sm:$0x1] %v699
        %v703 = vld [vmem:[%s457] sm:$0x1]
        %v704 = vcvt.s32.f32 %v579
        %v706 = vrot.slane %v704, 1
        %v708 = vadd.f32 %v704, %v706
        %v709 = vadd.f32 %v703, %v708
        %710 = vst [vmem:[%s457] sm:$0x1] %v709
        %s711 = sand.u32 %s167, 1
        %s712 = scalar_lea.sflag [#allocation4], %s711
        %s713 = sand.u32 %s167, 1
        %s714 = smul.addr %s713, 4
        %s715 = scalar_lea.vmem [#allocation7], %s714
        %s716 = sand.u32 %s35, 1
        %s717 = scalar_lea.sflag [#allocation9], %s716
        %s718 = sand.u32 %s193, 1
        %s719 = smul.addr %s718, 4
        %s720 = scalar_lea.vmem [#allocation8], %s719
        %s721 = sand.u32 %s35, 1
        %s722 = scalar_lea.sflag [#allocation9], %s721
        %s723 = sand.u32 %s219, 1
        %s724 = smul.addr %s723, 3
        %s725 = scalar_lea.vmem [#allocation10], %s724
        %s726 = sand.u32 %s35, 1
        %s727 = scalar_lea.sflag [#allocation12], %s726
        %s728 = sand.u32 %s245, 1
        %s729 = smul.addr %s728, 3
        %s730 = scalar_lea.vmem [#allocation11], %s729
        %s731 = sand.u32 %s35, 1
        %s732 = scalar_lea.sflag [#allocation12], %s731
        %s733 = sand.u32 %s271, 1
        %s734 = scalar_lea.vmem [#allocation13], %s733
        // Predicated region
        $region49: #{tpu_custom_call.1} parent=35 // pred_check
          %p735 = pneg %p177
        $region50: #{tpu_custom_call.1} parent=35 // pred_check_branch
          %737 = sbr.rel (%p735) target = $region52
        $region51: #{tpu_custom_call.1} parent=35 // pred_region
          %s739 = ssub.s32 64, 64
          %740 = vsyncadd %s712, %s739
          %s741 = smul.addr %s39, 4
          %s742 = smul.addr %s741, 16
          %s743 = scalar_lea.hbm %s4, %s742
          %s744 = sshll.u32 %s715, 4
          %s745 = int_to_ptr.vmem [resolvable:$true] %s744
          %750 = dma.vmem_to_hbm [thread:$0]  %s745, 64, %s743, %s712, 16, 16, 1
        $region52: #{tpu_custom_call.1} parent=35 // pred_fallthru
          _
        // Predicated region
        $region53: #{tpu_custom_call.1} parent=35 // pred_check
          %p751 = pneg %p203
        $region54: #{tpu_custom_call.1} parent=35 // pred_check_branch
          %753 = sbr.rel (%p751) target = $region56
        $region55: #{tpu_custom_call.1} parent=35 // pred_region
          %s755 = ssub.s32 64, 64
          %756 = vsyncadd %s717, %s755
          %s757 = smul.addr %s39, 4
          %s758 = smul.addr %s757, 16
          %s759 = scalar_lea.hbm %s5, %s758
          %s760 = sshll.u32 %s720, 4
          %s761 = int_to_ptr.vmem [resolvable:$true] %s760
          %766 = dma.vmem_to_hbm [thread:$0]  %s761, 64, %s759, %s717, 16, 16, 1
        $region56: #{tpu_custom_call.1} parent=35 // pred_fallthru
          _
        // Predicated region
        $region57: #{tpu_custom_call.1} parent=35 // pred_check
          %p767 = pneg %p229
        $region58: #{tpu_custom_call.1} parent=35 // pred_check_branch
          %769 = sbr.rel (%p767) target = $region60
        $region59: #{tpu_custom_call.1} parent=35 // pred_region
          %s771 = ssub.s32 48, 48
          %772 = vsyncadd %s722, %s771
          %s773 = smul.addr %s39, 3
          %s774 = smul.addr %s773, 16
          %s775 = scalar_lea.hbm %s6, %s774
          %s776 = sshll.u32 %s725, 4
          %s777 = int_to_ptr.vmem [resolvable:$true] %s776
          %782 = dma.vmem_to_hbm [thread:$0]  %s777, 48, %s775, %s722, 16, 16, 1
        $region60: #{tpu_custom_call.1} parent=35 // pred_fallthru
          _
        // Predicated region
        $region61: #{tpu_custom_call.1} parent=35 // pred_check
          %p783 = pneg %p255
        $region62: #{tpu_custom_call.1} parent=35 // pred_check_branch
          %785 = sbr.rel (%p783) target = $region64
        $region63: #{tpu_custom_call.1} parent=35 // pred_region
          %s787 = ssub.s32 48, 48
          %788 = vsyncadd %s727, %s787
          %s789 = smul.addr %s39, 3
          %s790 = smul.addr %s789, 16
          %s791 = scalar_lea.hbm %s7, %s790
          %s792 = sshll.u32 %s730, 4
          %s793 = int_to_ptr.vmem [resolvable:$true] %s792
          %798 = dma.vmem_to_hbm [thread:$0]  %s793, 48, %s791, %s727, 16, 16, 1
        $region64: #{tpu_custom_call.1} parent=35 // pred_fallthru
          _
        // Predicated region
        $region65: #{tpu_custom_call.1} parent=35 // pred_check
          %p799 = pneg %p281
        $region66: #{tpu_custom_call.1} parent=35 // pred_check_branch
          %801 = sbr.rel (%p799) target = $region68
        $region67: #{tpu_custom_call.1} parent=35 // pred_region
          %s803 = ssub.s32 16, 16
          %804 = vsyncadd %s732, %s803
          %s805 = smul.addr %s39, 16
          %s806 = scalar_lea.hbm %s8, %s805
          %s808 = sshll.u32 %s734, 4
          %s809 = int_to_ptr.vmem [resolvable:$true] %s808
          %811 = dma.vmem_to_hbm [thread:$0]  %s809, 16, %s806, %s732
        $region68: #{tpu_custom_call.1} parent=35 // pred_fallthru
          _
      $region36: #{tpu_custom_call.1} parent=5 // pred_fallthru
        _
      %p812 = scmp.le.s32.totalorder 2, %s30
      // Predicated region
      $region69: #{tpu_custom_call.1} parent=5 // pred_check
        %p813 = pneg %p812
      $region70: #{tpu_custom_call.1} parent=5 // pred_check_branch
        %815 = sbr.rel (%p813) target = $region72
      $region71: #{tpu_custom_call.1} parent=5 // pred_region
        %s816 = ssub.s32 %s30, 2
        // Predicated region
        $region73: #{tpu_custom_call.1} parent=71 // pred_check
          %p817 = pneg %p183
        $region74: #{tpu_custom_call.1} parent=71 // pred_check_branch
          %819 = sbr.rel (%p817) target = $region76
        $region75: #{tpu_custom_call.1} parent=71 // pred_region
          %s820 = sand.u32 %s168, 1
          %s821 = scalar_lea.sflag [#allocation4], %s820
          %s822 = sand.u32 %s168, 1
          %s823 = smul.addr %s822, 4
          %s824 = scalar_lea.vmem [#allocation7], %s823
          %825 = dma.done %s821, 64
        $region76: #{tpu_custom_call.1} parent=71 // pred_fallthru
          _
        // Predicated region
        $region77: #{tpu_custom_call.1} parent=71 // pred_check
          %p826 = pneg %p209
        $region78: #{tpu_custom_call.1} parent=71 // pred_check_branch
          %828 = sbr.rel (%p826) target = $region80
        $region79: #{tpu_custom_call.1} parent=71 // pred_region
          %s829 = sand.u32 %s36, 1
          %s830 = scalar_lea.sflag [#allocation9], %s829
          %s831 = sand.u32 %s194, 1
          %s832 = smul.addr %s831, 4
          %s833 = scalar_lea.vmem [#allocation8], %s832
          %834 = dma.done %s830, 64
        $region80: #{tpu_custom_call.1} parent=71 // pred_fallthru
          _
        // Predicated region
        $region81: #{tpu_custom_call.1} parent=71 // pred_check
          %p835 = pneg %p235
        $region82: #{tpu_custom_call.1} parent=71 // pred_check_branch
          %837 = sbr.rel (%p835) target = $region84
        $region83: #{tpu_custom_call.1} parent=71 // pred_region
          %s838 = sand.u32 %s36, 1
          %s839 = scalar_lea.sflag [#allocation9], %s838
          %s840 = sand.u32 %s220, 1
          %s841 = smul.addr %s840, 3
          %s842 = scalar_lea.vmem [#allocation10], %s841
          %843 = dma.done %s839, 48
        $region84: #{tpu_custom_call.1} parent=71 // pred_fallthru
          _
        // Predicated region
        $region85: #{tpu_custom_call.1} parent=71 // pred_check
          %p844 = pneg %p261
        $region86: #{tpu_custom_call.1} parent=71 // pred_check_branch
          %846 = sbr.rel (%p844) target = $region88
        $region87: #{tpu_custom_call.1} parent=71 // pred_region
          %s847 = sand.u32 %s36, 1
          %s848 = scalar_lea.sflag [#allocation12], %s847
          %s849 = sand.u32 %s246, 1
          %s850 = smul.addr %s849, 3
          %s851 = scalar_lea.vmem [#allocation11], %s850
          %852 = dma.done %s848, 48
        $region88: #{tpu_custom_call.1} parent=71 // pred_fallthru
          _
        // Predicated region
        $region89: #{tpu_custom_call.1} parent=71 // pred_check
          %p853 = pneg %p287
        $region90: #{tpu_custom_call.1} parent=71 // pred_check_branch
          %855 = sbr.rel (%p853) target = $region92
        $region91: #{tpu_custom_call.1} parent=71 // pred_region
          %s856 = sand.u32 %s36, 1
          %s857 = scalar_lea.sflag [#allocation12], %s856
          %s858 = sand.u32 %s272, 1
          %s859 = scalar_lea.vmem [#allocation13], %s858
          %860 = dma.done %s857, 16
        $region92: #{tpu_custom_call.1} parent=71 // pred_fallthru
          _
      $region72: #{tpu_custom_call.1} parent=5 // pred_fallthru
        _
    $region6: #{tpu_custom_call.1} parent=1 // loop_footer
      %s34 = sadd.s32 1, %s30
    $region7: #{tpu_custom_call.1} parent=1 // loop_footer_branch
      %29 = sbr.rel target = $region3
    $region8: #{tpu_custom_call.1} parent=1 // loop_exit
      _
    %861 = vsyncpa [#allocation3], 1
    %s862 = scalar_lea.sflag [#allocation3], 1
    %863 = vsyncpa %s862, 1
    %864 = vsyncpa [#allocation6], 1
    %s865 = scalar_lea.sflag [#allocation6], 1
    %866 = vsyncpa %s865, 1
    %867 = vsyncpa [#allocation4], 1
    %s868 = scalar_lea.sflag [#allocation4], 1
    %869 = vsyncpa %s868, 1
    %870 = vsyncpa [#allocation9], 1
    %s871 = scalar_lea.sflag [#allocation9], 1
    %872 = vsyncpa %s871, 1
    %873 = vsyncpa [#allocation12], 1
    %s874 = scalar_lea.sflag [#allocation12], 1
    %875 = vsyncpa %s874, 1

</llo_original>
